<compile_context>
chip_gen: v7x
topology: tpu7x:2x2x1
jax: 0.10.0
libtpu: 0.0.40
codegen_flags: <defaults>
</compile_context>

<pallas_src>
import math

import jax
import jax.numpy as jnp
from jax import lax
from jax.experimental import pallas as pl
from jax.experimental.pallas import tpu as pltpu


def _round_up(x, m):
    return -(-x // m) * m


_TARGET_M = 1024          # target MXU M = tH * BWp per grid step


# ----------------------------- Pallas kernel ------------------------------ #

def _make_conv_kernel(stride, ksize):
    def kernel(x_hbm, w_ref, b_ref, conv_ref, act_ref, slab_ref, sem_ref):
        # x_hbm:    (H_need, BWp, Cin_p) bf16, resident in HBM (manual DMA)
        # w_ref:    (K, Cin_p, tCo)      bf16 weight tile (one output-chan tile)
        # b_ref:    (1, tCo)             f32 bias tile
        # conv_ref: (tH, BWp, tCo)       f32 raw conv output tile
        # act_ref:  (tH, BWp, tCo)       bf16 LeakyReLU(0.1) tile (next layer in)
        # slab_ref: (2, slab_len, BWp, Cin_p) bf16 double-buffered input slab
        # sem_ref:  (2,) DMA semaphores
        h = pl.program_id(1)
        n_h = pl.num_programs(1)
        tH, BWp, tCo = conv_ref.shape
        slab_len = slab_ref.shape[1]
        Cin_p = slab_ref.shape[3]
        hop = tH * stride
        M = tH * BWp

        def slab_copy(hh, slot):
            return pltpu.make_async_copy(
                x_hbm.at[pl.ds(hh * hop, slab_len)],
                slab_ref.at[slot],
                sem_ref.at[slot],
            )

        # Manual double-buffered pipeline over the h (time-tile) axis: the slab
        # for step h+1 is prefetched while step h computes.
        @pl.when(h == 0)
        def _():
            slab_copy(0, 0).start()

        slot = h % 2
        slab_copy(h, slot).wait()

        @pl.when(h + 1 < n_h)
        def _():
            slab_copy(h + 1, (h + 1) % 2).start()

        # Accumulator starts at the broadcast bias; one MXU matmul per conv tap
        # (bf16 x bf16 -> f32 accumulation).
        acc = jnp.broadcast_to(b_ref[...], (M, tCo)).astype(jnp.float32)
        for k in range(ksize):               # static unroll over <= 5 taps
            if stride == 1:
                xk = slab_ref[slot, pl.ds(k, tH)]
            else:
                xk = slab_ref[slot, pl.ds(k, tH, stride=stride)]
            xk = xk.reshape(M, Cin_p)
            acc = acc + jnp.dot(xk, w_ref[k], preferred_element_type=jnp.float32)

        conv_ref[...] = acc.reshape(tH, BWp, tCo)
        act = jnp.where(acc >= 0.0, acc, 0.1 * acc)
        act_ref[...] = act.reshape(tH, BWp, tCo).astype(act_ref.dtype)

    return kernel


def conv_layer_pallas(x_k, w_k, b_k, *, stride, ksize, pad):
    """x_k: (H_in, BWp, Cin_p) bf16; w_k: (K, Cin_p, Cout_p) bf16; b_k: (1, Cout_p) f32.

    Returns (conv_f32, act_bf16, H_out); the arrays are (H_out_pad, BWp, Cout_p)
    in kernel layout with H_out_pad = n_h * tH >= H_out.
    """
    H_in, BWp, Cin_p = x_k.shape
    K = ksize
    Cout_p = w_k.shape[2]
    H_out = (H_in + 2 * pad - K) // stride + 1

    tCo = min(Cout_p, 256)
    n_co = Cout_p // tCo
    tH = min(max(8, _round_up(_TARGET_M // BWp, 8)), _round_up(H_out, 8), 256)
    n_h = pl.cdiv(H_out, tH)
    H_out_pad = n_h * tH
    slab_len = (tH - 1) * stride + K

    # Zero-pad along H: `pad` rows on the left (conv padding), and enough on the
    # right so every DMA slab stays in bounds.
    H_need = (n_h - 1) * tH * stride + slab_len
    x_p = jnp.pad(x_k, ((pad, H_need - pad - H_in), (0, 0), (0, 0)))

    cost = pl.CostEstimate(
        flops=int(2 * H_out_pad * BWp * Cout_p * K * Cin_p),
        transcendentals=0,
        bytes_accessed=int(x_p.size * 2 * n_co + w_k.size * 2 + b_k.size * 4
                           + H_out_pad * BWp * Cout_p * 6),
    )

    conv_o, act_o = pl.pallas_call(
        _make_conv_kernel(stride, K),
        grid=(n_co, n_h),          # co outer (weights DMA'd once per tile), h inner
        in_specs=[
            pl.BlockSpec(memory_space=pl.ANY),                        # input stays in HBM
            pl.BlockSpec((K, Cin_p, tCo), lambda co, h: (0, 0, co)),  # weight tile
            pl.BlockSpec((1, tCo), lambda co, h: (0, co)),            # bias tile
        ],
        out_specs=(
            pl.BlockSpec((tH, BWp, tCo), lambda co, h: (h, 0, co)),
            pl.BlockSpec((tH, BWp, tCo), lambda co, h: (h, 0, co)),
        ),
        out_shape=(
            jax.ShapeDtypeStruct((H_out_pad, BWp, Cout_p), jnp.float32),
            jax.ShapeDtypeStruct((H_out_pad, BWp, Cout_p), jnp.bfloat16),
        ),
        scratch_shapes=[
            pltpu.VMEM((2, slab_len, BWp, Cin_p), jnp.bfloat16),
            pltpu.SemaphoreType.DMA((2,)),
        ],
        compiler_params=pltpu.CompilerParams(
            # The manual slab double-buffering assumes sequential h steps, so
            # both axes are "arbitrary" (no megacore sharding of this kernel).
            dimension_semantics=("arbitrary", "arbitrary"),
            vmem_limit_bytes=48 * 1024 * 1024,
        ),
        cost_estimate=cost,
    )(x_p, w_k, b_k)
    return conv_o, act_o, H_out


# --------------------------- parameters / glue ----------------------------- #

LAYER_CFG = [
    # (Cin, Cout, K, stride, pad, has_leaky_relu)
    (1, 32, 5, 1, 2, True),
    (32, 128, 5, 2, 2, True),
    (128, 512, 5, 2, 2, True),
    (512, 1024, 5, 2, 2, True),
    (1024, 1024, 5, 2, 2, True),
    (1024, 1, 3, 1, 1, False),
]


def init_period_disc_params(key):
    params = []
    for (cin, cout, k, stride, pad, has_act) in LAYER_CFG:
        key, kw, kb = jax.random.split(key, 3)
        fan_in = cin * k
        w = jax.random.normal(kw, (cout, cin, k, 1), jnp.float32) / math.sqrt(fan_in)
        b = 0.1 * jax.random.normal(kb, (cout,), jnp.float32)
        cout_p = _round_up(max(cout, 128), 128)
        fold_taps = (cin == 1 and k > 1)   # layer 1: fold K*Cin into the contraction
        if fold_taps:
            cin_p = _round_up(max(k * cin, 128), 128)
            wk = jnp.transpose(w[:, 0, :, 0], (1, 0))                     # (K, Cout)
            wk = jnp.pad(wk, ((0, cin_p - k * cin), (0, cout_p - cout)))[None]
        else:
            cin_p = _round_up(max(cin, 128), 128)
            wk = jnp.transpose(w[:, :, :, 0], (2, 1, 0))                  # (K, Cin, Cout)
            wk = jnp.pad(wk, ((0, 0), (0, cin_p - cin), (0, cout_p - cout)))
        b_k = jnp.pad(b, (0, cout_p - cout))[None, :]                     # (1, Cout_p)
        params.append(dict(
            w=w, b=b, w_k=wk.astype(jnp.bfloat16), b_k=b_k,
            cin=cin, cout=cout, k=k, stride=stride, pad=pad,
            has_act=has_act, fold_taps=fold_taps))
    return params


def period_disc_forward(x, params, period):
    """x: (B, 1, T) float32 -> list of NCHW feature maps + final flat tensor,
    matching the torch module's output order/shapes/dtypes."""
    B, C, T = x.shape
    if T % period != 0:
        pad_len = period - T % period
        x = jnp.pad(x, ((0, 0), (0, 0), (0, pad_len)), mode="reflect")
        T = T + pad_len
    H = T // period
    W = period
    BW = B * W
    BWp = _round_up(BW, 8)

    # NCHW (B, 1, H, W) -> kernel layout (H, B*W, C), bf16, BW padded to mult of 8.
    cur = jnp.transpose(x.reshape(B, C, H, W), (2, 0, 3, 1)).reshape(H, BW, C)
    cur = jnp.pad(cur, ((0, 0), (0, BWp - BW), (0, 0))).astype(jnp.bfloat16)

    features = []
    conv_nchw = None
    for p in params:
        if p["fold_taps"]:
            # Layer 1 (Cin=1): im2col the K taps into the channel axis so the
            # conv becomes a single (ksize=1, stride=1, pad=0) matmul.
            k0, s0, p0 = p["k"], p["stride"], p["pad"]
            h_pre = (cur.shape[0] + 2 * p0 - k0) // s0 + 1
            xpad = jnp.pad(cur, ((p0, p0), (0, 0), (0, 0)))
            cols = [lax.slice_in_dim(xpad, k, k + (h_pre - 1) * s0 + 1,
                                     stride=s0, axis=0) for k in range(k0)]
            x_in = jnp.concatenate(cols, axis=-1)        # (h_pre, BWp, K*Cin)
            eff_k, eff_s, eff_pad = 1, 1, 0
        else:
            x_in = cur
            eff_k, eff_s, eff_pad = p["k"], p["stride"], p["pad"]

        cin_p = p["w_k"].shape[1]
        if x_in.shape[2] != cin_p:
            x_in = jnp.pad(x_in, ((0, 0), (0, 0), (0, cin_p - x_in.shape[2])))

        conv_o, act_o, H_out = conv_layer_pallas(
            x_in, p["w_k"], p["b_k"], stride=eff_s, ksize=eff_k, pad=eff_pad)

        # NCHW fp32 feature maps, exactly as the torch module returns them.
        conv_c = conv_o[:H_out, :BW, :p["cout"]]
        conv_nchw = jnp.transpose(conv_c.reshape(H_out, B, W, p["cout"]),
                                  (1, 3, 0, 2))          # (B, Cout, H_out, W)
        features.append(conv_nchw)
        if p["has_act"]:
            features.append(jnp.where(conv_nchw >= 0.0, conv_nchw, 0.1 * conv_nchw))
            # Next layer consumes the activation in kernel layout (bf16): no
            # NCHW round trip between layers.
            cur = act_o[:H_out]

    features.append(conv_nchw.reshape(B, -1))            # torch.flatten(x, 1, -1)
    return features


def multi_period_discriminator_forward(x, all_params, periods):
    return [period_disc_forward(x, p, per) for p, per in zip(all_params, periods)]


# ----------------------------- pure-JAX reference -------------------------- #

def ref_period_disc_forward(x, params, period):
    """Reference that mirrors the kernel numerics: bf16 MXU operands, fp32
    accumulation, bf16 inter-layer activations, fp32 feature maps."""
    B, C, T = x.shape
    if T % period != 0:
        pad_len = period - T % period
        x = jnp.pad(x, ((0, 0), (0, 0), (0, pad_len)), mode="reflect")
        T = T + pad_len
    cur = x.reshape(B, C, T // period, period).astype(jnp.bfloat16)
    feats = []
    out = None
    for p in params:
        out = lax.conv_general_dilated(
            cur, p["w"].astype(jnp.bfloat16),
            window_strides=(p["stride"], 1),
            padding=((p["pad"], p["pad"]), (0, 0)),
            dimension_numbers=("NCHW", "OIHW", "NCHW"),
            preferred_element_type=jnp.float32)
        out = out + p["b"][None, :, None, None]
        feats.append(out)
        if p["has_act"]:
            out = jnp.where(out >= 0.0, out, 0.1 * out)
            feats.append(out)
            cur = out.astype(jnp.bfloat16)
    feats.append(out.reshape(B, -1))
    return feats


# ----------------------------------- main ---------------------------------- #

if __name__ == "__main__":
    periods = [2, 3, 5, 7, 11]
    key = jax.random.PRNGKey(0)
    key, kx = jax.random.split(key)
    B, T = 2, 16
    x = jax.random.normal(kx, (B, 1, T), jnp.float32)

    all_params = []
    for _ in periods:
        key, sub = jax.random.split(key)
        all_params.append(init_period_disc_params(sub))

    outs = multi_period_discriminator_forward(x, all_params, periods)
    jax.block_until_ready(outs)

    # Correctness check against a matched-precision pure-JAX reference.
    for per, params, feats in zip(periods, all_params, outs):
        refs = ref_period_disc_forward(x, params, per)
        assert len(feats) == len(refs), (per, len(feats), len(refs))
        for a, r in zip(feats, refs):
            assert a.shape == r.shape and a.dtype == r.dtype, \
                (per, a.shape, r.shape, a.dtype, r.dtype)
            err = float(jnp.max(jnp.abs(a - r)))
            assert err < 1e-2, (per, a.shape, err)

    print("KERNEL_OK")
</pallas_src>

<mosaic_0001>
module attributes {stable_mosaic.version = 11 : i64} {
  func.func @kernel(%arg0: i32, %arg1: i32, %arg2: memref<8x8x128xbf16, #tpu.memory_space<any>>, %arg3: memref<1x128x128xbf16, #tpu.memory_space<vmem>>, %arg4: memref<1x128xf32, #tpu.memory_space<vmem>>, %arg5: memref<8x8x128xf32, #tpu.memory_space<vmem>>, %arg6: memref<8x8x128xbf16, #tpu.memory_space<vmem>>, %arg7: memref<2x8x8x128xbf16, #tpu.memory_space<vmem>>, %arg8: memref<2x!tpu.dma_semaphore, #tpu.memory_space<semaphore_mem>>) attributes {dimension_semantics = [#tpu.dimension_semantics<arbitrary>, #tpu.dimension_semantics<arbitrary>], iteration_bounds = array<i64: 1, 1>, scalar_prefetch = 0 : i64, scratch_operands = 2 : i64, tpu.core_type = #tpu.core_type<tc>, window_params = [{}, {transform_indices = @transform_1, window_bounds = array<i64: 1, 128, 128>}, {transform_indices = @transform_2, window_bounds = array<i64: 1, 128>}, {transform_indices = @transform_3, window_bounds = array<i64: 8, 8, 128>}, {transform_indices = @transform_4, window_bounds = array<i64: 8, 8, 128>}]} {
    %c0_i32 = arith.constant 0 : i32
    %0 = arith.cmpi eq, %arg1, %c0_i32 : i32
    %1 = arith.extui %0 : i1 to i32
    %c0_i32_0 = arith.constant 0 : i32
    %2 = arith.cmpi ne, %1, %c0_i32_0 : i32
    scf.if %2 {
      %c0_i32_28 = arith.constant 0 : i32
      %c0_i32_29 = arith.constant 0 : i32
      %c0_i32_30 = arith.constant 0 : i32
      %c0_i32_31 = arith.constant 0 : i32
      %c0_i32_32 = arith.constant 0 : i32
      %44 = tpu.memref_slice %arg2[%c0_i32_30, %c0_i32_31, %c0_i32_32] : memref<8x8x128xbf16, #tpu.memory_space<any>> -> memref<8x8x128xbf16, #tpu.memory_space<any>>
      %c0_i32_33 = arith.constant 0 : i32
      %c0_i32_34 = arith.constant 0 : i32
      %c0_i32_35 = arith.constant 0 : i32
      %45 = tpu.memref_slice %arg7[%c0_i32_28, %c0_i32_33, %c0_i32_34, %c0_i32_35] : memref<2x8x8x128xbf16, #tpu.memory_space<vmem>> -> memref<1x8x8x128xbf16, #tpu.memory_space<vmem>>
      %46 = tpu.memref_squeeze %45 : memref<1x8x8x128xbf16, #tpu.memory_space<vmem>> -> memref<8x8x128xbf16, #tpu.memory_space<vmem>>
      %47 = tpu.memref_slice %arg8[%c0_i32_29] : memref<2x!tpu.dma_semaphore, #tpu.memory_space<semaphore_mem>> -> memref<1x!tpu.dma_semaphore, #tpu.memory_space<semaphore_mem>>
      %48 = tpu.memref_squeeze %47 : memref<1x!tpu.dma_semaphore, #tpu.memory_space<semaphore_mem>> -> memref<!tpu.dma_semaphore, #tpu.memory_space<semaphore_mem>>
      tpu.enqueue_dma source(%44 : memref<8x8x128xbf16, #tpu.memory_space<any>>) target(%46 : memref<8x8x128xbf16, #tpu.memory_space<vmem>>) target_semaphore(%48 : memref<!tpu.dma_semaphore, #tpu.memory_space<semaphore_mem>>)
    } else {
    }
    %c2_i32 = arith.constant 2 : i32
    %c0_i32_1 = arith.constant 0 : i32
    %3 = arith.cmpi eq, %c2_i32, %c0_i32_1 : i32
    %c1_i32 = arith.constant 1 : i32
    %4 = arith.select %3, %c1_i32, %c2_i32 : i32
    %5 = arith.remsi %arg1, %4 : i32
    %c0_i32_2 = arith.constant 0 : i32
    %6 = arith.cmpi ne, %5, %c0_i32_2 : i32
    %c0_i32_3 = arith.constant 0 : i32
    %7 = arith.cmpi slt, %5, %c0_i32_3 : i32
    %c0_i32_4 = arith.constant 0 : i32
    %8 = arith.cmpi slt, %4, %c0_i32_4 : i32
    %9 = arith.xori %7, %8 : i1
    %10 = arith.andi %9, %6 : i1
    %11 = arith.addi %5, %4 : i32
    %12 = arith.select %10, %11, %5 : i32
    %c8_i32 = arith.constant 8 : i32
    %13 = arith.muli %arg1, %c8_i32 : i32
    %c0_i32_5 = arith.constant 0 : i32
    %c0_i32_6 = arith.constant 0 : i32
    %14 = tpu.memref_slice %arg2[%13, %c0_i32_5, %c0_i32_6] : memref<8x8x128xbf16, #tpu.memory_space<any>> -> memref<8x8x128xbf16, #tpu.memory_space<any>>
    %c0_i32_7 = arith.constant 0 : i32
    %c0_i32_8 = arith.constant 0 : i32
    %c0_i32_9 = arith.constant 0 : i32
    %15 = tpu.memref_slice %arg7[%12, %c0_i32_7, %c0_i32_8, %c0_i32_9] : memref<2x8x8x128xbf16, #tpu.memory_space<vmem>> -> memref<1x8x8x128xbf16, #tpu.memory_space<vmem>>
    %16 = tpu.memref_squeeze %15 : memref<1x8x8x128xbf16, #tpu.memory_space<vmem>> -> memref<8x8x128xbf16, #tpu.memory_space<vmem>>
    %17 = tpu.memref_slice %arg8[%12] : memref<2x!tpu.dma_semaphore, #tpu.memory_space<semaphore_mem>> -> memref<1x!tpu.dma_semaphore, #tpu.memory_space<semaphore_mem>>
    %18 = tpu.memref_squeeze %17 : memref<1x!tpu.dma_semaphore, #tpu.memory_space<semaphore_mem>> -> memref<!tpu.dma_semaphore, #tpu.memory_space<semaphore_mem>>
    tpu.wait_dma2 semaphore(%18 : memref<!tpu.dma_semaphore, #tpu.memory_space<semaphore_mem>>) src(%14 : memref<8x8x128xbf16, #tpu.memory_space<any>>) dst(%16 : memref<8x8x128xbf16, #tpu.memory_space<vmem>>)
    %c1_i32_10 = arith.constant 1 : i32
    %19 = arith.addi %arg1, %c1_i32_10 : i32
    %c1_i32_11 = arith.constant 1 : i32
    %20 = arith.cmpi slt, %19, %c1_i32_11 : i32
    %21 = arith.extui %20 : i1 to i32
    %c0_i32_12 = arith.constant 0 : i32
    %22 = arith.cmpi ne, %21, %c0_i32_12 : i32
    scf.if %22 {
      %c1_i32_28 = arith.constant 1 : i32
      %44 = arith.addi %arg1, %c1_i32_28 : i32
      %c1_i32_29 = arith.constant 1 : i32
      %45 = arith.addi %arg1, %c1_i32_29 : i32
      %c2_i32_30 = arith.constant 2 : i32
      %c0_i32_31 = arith.constant 0 : i32
      %46 = arith.cmpi eq, %c2_i32_30, %c0_i32_31 : i32
      %c1_i32_32 = arith.constant 1 : i32
      %47 = arith.select %46, %c1_i32_32, %c2_i32_30 : i32
      %48 = arith.remsi %45, %47 : i32
      %c0_i32_33 = arith.constant 0 : i32
      %49 = arith.cmpi ne, %48, %c0_i32_33 : i32
      %c0_i32_34 = arith.constant 0 : i32
      %50 = arith.cmpi slt, %48, %c0_i32_34 : i32
      %c0_i32_35 = arith.constant 0 : i32
      %51 = arith.cmpi slt, %47, %c0_i32_35 : i32
      %52 = arith.xori %50, %51 : i1
      %53 = arith.andi %52, %49 : i1
      %54 = arith.addi %48, %47 : i32
      %55 = arith.select %53, %54, %48 : i32
      %c8_i32_36 = arith.constant 8 : i32
      %56 = arith.muli %44, %c8_i32_36 : i32
      %c0_i32_37 = arith.constant 0 : i32
      %c0_i32_38 = arith.constant 0 : i32
      %57 = tpu.memref_slice %arg2[%56, %c0_i32_37, %c0_i32_38] : memref<8x8x128xbf16, #tpu.memory_space<any>> -> memref<8x8x128xbf16, #tpu.memory_space<any>>
      %c0_i32_39 = arith.constant 0 : i32
      %c0_i32_40 = arith.constant 0 : i32
      %c0_i32_41 = arith.constant 0 : i32
      %58 = tpu.memref_slice %arg7[%55, %c0_i32_39, %c0_i32_40, %c0_i32_41] : memref<2x8x8x128xbf16, #tpu.memory_space<vmem>> -> memref<1x8x8x128xbf16, #tpu.memory_space<vmem>>
      %59 = tpu.memref_squeeze %58 : memref<1x8x8x128xbf16, #tpu.memory_space<vmem>> -> memref<8x8x128xbf16, #tpu.memory_space<vmem>>
      %60 = tpu.memref_slice %arg8[%55] : memref<2x!tpu.dma_semaphore, #tpu.memory_space<semaphore_mem>> -> memref<1x!tpu.dma_semaphore, #tpu.memory_space<semaphore_mem>>
      %61 = tpu.memref_squeeze %60 : memref<1x!tpu.dma_semaphore, #tpu.memory_space<semaphore_mem>> -> memref<!tpu.dma_semaphore, #tpu.memory_space<semaphore_mem>>
      tpu.enqueue_dma source(%57 : memref<8x8x128xbf16, #tpu.memory_space<any>>) target(%59 : memref<8x8x128xbf16, #tpu.memory_space<vmem>>) target_semaphore(%61 : memref<!tpu.dma_semaphore, #tpu.memory_space<semaphore_mem>>)
    } else {
    }
    %c0 = arith.constant 0 : index
    %c0_13 = arith.constant 0 : index
    %23 = vector.load %arg4[%c0, %c0_13] : memref<1x128xf32, #tpu.memory_space<vmem>>, vector<1x128xf32>
    %24 = vector.shape_cast %23 : vector<1x128xf32> to vector<1x128xf32>
    %25 = vector.broadcast %24 : vector<1x128xf32> to vector<64x128xf32>
    %26 = arith.index_cast %12 : i32 to index
    %c0_14 = arith.constant 0 : index
    %c0_15 = arith.constant 0 : index
    %c0_16 = arith.constant 0 : index
    %27 = vector.load %arg7[%26, %c0_14, %c0_15, %c0_16] : memref<2x8x8x128xbf16, #tpu.memory_space<vmem>>, vector<1x8x8x128xbf16>
    %28 = vector.shape_cast %27 : vector<1x8x8x128xbf16> to vector<8x8x128xbf16>
    %29 = vector.shape_cast %28 : vector<8x8x128xbf16> to vector<64x128xbf16>
    %c0_17 = arith.constant 0 : index
    %c0_18 = arith.constant 0 : index
    %c0_19 = arith.constant 0 : index
    %30 = vector.load %arg3[%c0_17, %c0_18, %c0_19] : memref<1x128x128xbf16, #tpu.memory_space<vmem>>, vector<1x128x128xbf16>
    %31 = vector.shape_cast %30 : vector<1x128x128xbf16> to vector<128x128xbf16>
    %cst = arith.constant dense<0.000000e+00> : vector<64x128xf32>
    %32 = tpu.matmul %29, %31, %cst {dimension_numbers = #tpu.dot_dimension_numbers<[1], [0], [0], [1], [0, 0, 1, 1], [], []>} : vector<64x128xbf16>, vector<128x128xbf16>, vector<64x128xf32> -> vector<64x128xf32>
    %33 = arith.addf %25, %32 : vector<64x128xf32>
    %34 = vector.shape_cast %33 : vector<64x128xf32> to vector<8x8x128xf32>
    %c0_20 = arith.constant 0 : index
    %c0_21 = arith.constant 0 : index
    %c0_22 = arith.constant 0 : index
    %35 = vector.load %arg5[%c0_20, %c0_21, %c0_22] : memref<8x8x128xf32, #tpu.memory_space<vmem>>, vector<8x8x128xf32>
    tpu.vector_store %arg5[%c0_20, %c0_21, %c0_22], %34 {strides = array<i32>} : memref<8x8x128xf32, #tpu.memory_space<vmem>>, vector<8x8x128xf32>,
    %cst_23 = arith.constant 0.000000e+00 : f32
    %36 = vector.broadcast %cst_23 : f32 to vector<64x128xf32>
    %37 = arith.cmpf oge, %33, %36 : vector<64x128xf32>
    %cst_24 = arith.constant 1.000000e-01 : f32
    %38 = vector.broadcast %cst_24 : f32 to vector<64x128xf32>
    %39 = arith.mulf %38, %33 : vector<64x128xf32>
    %40 = arith.select %37, %33, %39 : vector<64x128xi1>, vector<64x128xf32>
    %41 = vector.shape_cast %40 : vector<64x128xf32> to vector<8x8x128xf32>
    %42 = arith.truncf %41 : vector<8x8x128xf32> to vector<8x8x128xbf16>
    %c0_25 = arith.constant 0 : index
    %c0_26 = arith.constant 0 : index
    %c0_27 = arith.constant 0 : index
    %43 = vector.load %arg6[%c0_25, %c0_26, %c0_27] : memref<8x8x128xbf16, #tpu.memory_space<vmem>>, vector<8x8x128xbf16>
    tpu.vector_store %arg6[%c0_25, %c0_26, %c0_27], %42 {strides = array<i32>} : memref<8x8x128xbf16, #tpu.memory_space<vmem>>, vector<8x8x128xbf16>,
    return
  }
  func.func @transform_1(%arg0: i32, %arg1: i32) -> (i32, i32, i32) {
    %c0_i32 = arith.constant 0 : i32
    %c0_i32_0 = arith.constant 0 : i32
    %c0_i32_1 = arith.constant 0 : i32
    return %c0_i32, %c0_i32_0, %arg0 : i32, i32, i32
  }
  func.func @transform_2(%arg0: i32, %arg1: i32) -> (i32, i32) {
    %c0_i32 = arith.constant 0 : i32
    %c0_i32_0 = arith.constant 0 : i32
    return %c0_i32, %arg0 : i32, i32
  }
  func.func @transform_3(%arg0: i32, %arg1: i32) -> (i32, i32, i32) {
    %c0_i32 = arith.constant 0 : i32
    %c0_i32_0 = arith.constant 0 : i32
    return %arg1, %c0_i32, %arg0 : i32, i32, i32
  }
  func.func @transform_4(%arg0: i32, %arg1: i32) -> (i32, i32, i32) {
    %c0_i32 = arith.constant 0 : i32
    %c0_i32_0 = arith.constant 0 : i32
    return %arg1, %c0_i32, %arg0 : i32, i32, i32
  }
}

</mosaic_0001>

<llo_original>
// kernel: tpu_custom_call.1
$region0: #{tpu_custom_call.1}
  #allocation0 [shape = 'u32[]', space=smem, size = 0x4, offset = 0x4, fixed_abs, tag = 'smem constant byte address 0x4 - core index']
  #allocation1 [shape = 'u32[144,128]{1,0:T(1,128)}', space=vmem, size = 0x12000, scoped, tag = 'internal scratch']
  #allocation2 [shape = 'bf16[2,8,8,128]{3,2,1,0:T(8,128)(2,1)}', space=vmem, size = 0x8000, scoped, tag = 'scratch operand']
  #allocation3 [shape = 's32[2]{0}', space=sflag, size = 0x8, scoped, tag = 'scratch operand']
  #allocation10 [shape = 's32[]', space=sflag, size = 0x4, offset = 0, fixed_abs, tag = 'sflag constant byte address 0x0 - dummy sync flag']
  #allocation11 [shape = 's32[]', space=sflag, size = 0x4, offset = 0, fixed_abs, tag = 'sflag constant byte address 0x0 - dummy sync flag']
  #allocation12 [shape = 'u32[]', space=smem, size = 0x4, offset = 0x44, fixed_abs, tag = 'smem constant byte address 0x44 - assertion arg 0']
  #allocation13 [shape = 'u32[]', space=smem, size = 0x4, offset = 0x48, fixed_abs, tag = 'smem constant byte address 0x48 - assertion arg 1']
  #allocation14 [shape = 's32[]', space=sflag, size = 0x4, offset = 0, fixed_abs, tag = 'sflag constant byte address 0x0 - dummy sync flag']
  #allocation15 [shape = 's32[]', space=sflag, size = 0x4, offset = 0, fixed_abs, tag = 'sflag constant byte address 0x0 - dummy sync flag']
  %s0 = inlined_call_operand.hbm [shape: bf16[8,8,128], index: 0, kind: input, shape index: {}]
  %s1 = inlined_call_operand.hbm [shape: bf16[1,128,128], index: 1, kind: input, shape index: {}]
  %s2 = inlined_call_operand.vmem [shape: f32[1,128], index: 2, kind: input, shape index: {}]
  %s3 = inlined_call_operand.hbm [shape: f32[8,8,128], index: 3, kind: output, shape index: {0}]
  %s4 = inlined_call_operand.hbm [shape: bf16[8,8,128], index: 4, kind: output, shape index: {1}]
  %5 = xla_tuple %s3, %s4
  %s6 = sld [smem:[#allocation0]]
  $region46: #{tpu_custom_call.1} parent=0
    _
  %s8 = ssub.s32 1, %s6
  %s9 = scalar_select 0, %s8, %s6
  $region1: #{tpu_custom_call.1} parent=0
    #allocation4 [shape = 'u8[32768]{0}', space=vmem, size = 0x8000, scoped, tag = 'input window, operand 1, single buffered']
    #allocation5 [shape = 's32[1]{0}', space=sflag, size = 0x4, scoped, tag = 'scoped memory for tpu_custom_call.1']
    #allocation6 [shape = 's32[1]{0}', space=sflag, size = 0x4, scoped, tag = 'scoped memory for tpu_custom_call.1']
    #allocation7 [shape = 'u8[32768]{0}', space=vmem, size = 0x8000, scoped, tag = 'output window, operand 0, single buffered']
    #allocation8 [shape = 'u8[16384]{0}', space=vmem, size = 0x4000, scoped, tag = 'output window, operand 1, single buffered']
    #allocation9 [shape = 's32[1]{0}', space=sflag, size = 0x4, scoped, tag = 'scoped memory for tpu_custom_call.1']
    %10 = vsyncpa [#allocation5], 0
    %11 = vsyncpa [#allocation6], 0
    %12 = vsyncpa [#allocation9], 0
    // Predicated region
    $region2: #{tpu_custom_call.1} parent=1 // pred_check
      _
    $region3: #{tpu_custom_call.1} parent=1 // pred_check_branch
      %14 = sbr.rel (0) target = $region5
    $region4: #{tpu_custom_call.1} parent=1 // pred_region
      %s16 = ssub.s32 1024, 1024
      %17 = vsyncadd [#allocation5], %s16
      %s18 = sshll.u32 [#allocation4], 4
      %s19 = int_to_ptr.vmem [resolvable:$true] %s18
      %24 = dma.hbm_to_vmem [thread:$0]  %s1, 1024, %s19, [#allocation5], 64, 64, 4
    $region5: #{tpu_custom_call.1} parent=1 // pred_fallthru
      _
    // Predicated region
    $region6: #{tpu_custom_call.1} parent=1 // pred_check
      _
    $region7: #{tpu_custom_call.1} parent=1 // pred_check_branch
      %26 = sbr.rel (0) target = $region9
    $region8: #{tpu_custom_call.1} parent=1 // pred_region
      _
    $region9: #{tpu_custom_call.1} parent=1 // pred_fallthru
      _
    // Predicated region
    $region10: #{tpu_custom_call.1} parent=1 // pred_check
      _
    $region11: #{tpu_custom_call.1} parent=1 // pred_check_branch
      %28 = sbr.rel (0) target = $region13
    $region12: #{tpu_custom_call.1} parent=1 // pred_region
      %29 = dma.done [#allocation5], 1024
    $region13: #{tpu_custom_call.1} parent=1 // pred_fallthru
      _
    %p31 = scmp.eq.s32.totalorder 0, 0
    // Predicated region
    $region14: #{tpu_custom_call.1} parent=1 // pred_check
      %p32 = pneg %p31
    $region15: #{tpu_custom_call.1} parent=1 // pred_check_branch
      %34 = sbr.rel (%p32) target = $region17
    $region16: #{tpu_custom_call.1} parent=1 // pred_region
      // Predicated region
      $region18: #{tpu_custom_call.1} parent=16 // pred_check
        _
      $region19: #{tpu_custom_call.1} parent=16 // pred_check_branch
        %36 = sbr.rel target = $region21
      $region20: #{tpu_custom_call.1} parent=16 // pred_region
        %37 = sst [smem:[#allocation12]] [#allocation11]
        %38 = sst [smem:[#allocation13]] [#allocation10]
      $region21: #{tpu_custom_call.1} parent=16 // pred_fallthru
        _
      %40 = shalt.err (0)
      %s42 = sshll.u32 [#allocation2], 4
      %s43 = int_to_ptr.vmem [resolvable:$true] %s42
      %45 = dma.hbm_to_vmem [thread:$0]  %s0, 512, %s43, [#allocation3]
    $region17: #{tpu_custom_call.1} parent=1 // pred_fallthru
      _
    %s46 = ssub.s32 0, 0
    %s47 = ssub.s32 0, 0
    %p48 = scmp.ne.s32.totalorder 0, 0
    %p49 = scmp.lt.s32.totalorder 0, 0
    %p50 = pnand %p49, %p48
    %p51 = pneg %p50
    %s52 = sadd.s32 0, 2
    %s53 = scalar_select %p51, %s52, 0
    %s54 = smul.u32 %s53, 8
    %s55 = smul.addr %s54, 4
    %s56 = scalar_lea.vmem [#allocation2], %s55
    %s57 = scalar_lea.sflag [#allocation3], %s53
    %s58 = smul.u32 4, 8
    %s59 = smul.u32 %s58, 1
    %s60 = smul.u32 %s59, 1
    %s61 = sshll.u32 %s60, 4
    %62 = dma.done %s57, %s61
    %s63 = sadd.s32 0, 1
    %p64 = scmp.lt.s32.totalorder %s63, 1
    // Predicated region
    $region22: #{tpu_custom_call.1} parent=1 // pred_check
      %p65 = pneg %p64
    $region23: #{tpu_custom_call.1} parent=1 // pred_check_branch
      %67 = sbr.rel (%p65) target = $region25
    $region24: #{tpu_custom_call.1} parent=1 // pred_region
      %p68 = scmp.lt.s32.totalorder %s63, 0
      %s69 = ssub.s32 0, %s63
      %s70 = scalar_select %p68, %s69, %s63
      %s71 = sand.u32 %s70, 1
      %s72 = ssub.s32 0, %s71
      %s73 = scalar_select %p68, %s72, %s71
      %p74 = scmp.ne.s32.totalorder %s73, 0
      %p75 = scmp.lt.s32.totalorder %s73, 0
      %p76 = pnand %p75, %p74
      %p77 = pneg %p76
      %s78 = sadd.s32 %s73, 2
      %s79 = scalar_select %p77, %s78, %s73
      %s80 = smul.u32 %s63, 8
      %s81 = smul.addr %s80, 64
      %s82 = scalar_lea.hbm %s0, %s81
      %s83 = smul.u32 %s79, 8
      %s84 = smul.addr %s83, 4
      %s85 = scalar_lea.vmem [#allocation2], %s84
      %s86 = scalar_lea.sflag [#allocation3], %s79
      // Predicated region
      $region26: #{tpu_custom_call.1} parent=24 // pred_check
        _
      $region27: #{tpu_custom_call.1} parent=24 // pred_check_branch
        %88 = sbr.rel target = $region29
      $region28: #{tpu_custom_call.1} parent=24 // pred_region
        %89 = sst [smem:[#allocation12]] [#allocation15]
        %90 = sst [smem:[#allocation13]] [#allocation14]
      $region29: #{tpu_custom_call.1} parent=24 // pred_fallthru
        _
      %92 = shalt.err (0)
      %s94 = sshll.u32 %s85, 4
      %s95 = int_to_ptr.vmem [resolvable:$true] %s94
      %97 = dma.hbm_to_vmem [thread:$0]  %s82, 512, %s95, %s86
    $region25: #{tpu_custom_call.1} parent=1 // pred_fallthru
      _
    %v98 = vld [vmem:[%s2] sm:$0x1]
    %v100 = vlaneseq
    %v101 = vshrl.u32 %v100, 7
    %v102 = vsub.s32 0, %v101
    %v103 = vrot.slane %v98, %v102
    %v105 = vld [vmem:[%s56] sm:$0xf]
    %v106 = vld [vmem:[%s56 + $0x4] sm:$0xf]
    %v107 = vld [vmem:[%s56 + $0x8] sm:$0xf]
    %v108 = vld [vmem:[%s56 + $0xc] sm:$0xf]
    %v109 = vld [vmem:[%s56 + $0x10] sm:$0xf]
    %v110 = vld [vmem:[%s56 + $0x14] sm:$0xf]
    %v111 = vld [vmem:[%s56 + $0x18] sm:$0xf]
    %v112 = vld [vmem:[%s56 + $0x1c] sm:$0xf]
    %v113 = vld [vmem:[#allocation4] sm:$0xf]
    %v114 = vld [vmem:[#allocation4 + $0x4] sm:$0xf]
    %v115 = vld [vmem:[#allocation4 + $0x8] sm:$0xf]
    %v116 = vld [vmem:[#allocation4 + $0xc] sm:$0xf]
    %v117 = vld [vmem:[#allocation4 + $0x10] sm:$0xf]
    %v118 = vld [vmem:[#allocation4 + $0x14] sm:$0xf]
    %v119 = vld [vmem:[#allocation4 + $0x18] sm:$0xf]
    %v120 = vld [vmem:[#allocation4 + $0x1c] sm:$0xf]
    %v121 = vld [vmem:[#allocation4 + $0x20] sm:$0xf]
    %v122 = vld [vmem:[#allocation4 + $0x24] sm:$0xf]
    %v123 = vld [vmem:[#allocation4 + $0x28] sm:$0xf]
    %v124 = vld [vmem:[#allocation4 + $0x2c] sm:$0xf]
    %v125 = vld [vmem:[#allocation4 + $0x30] sm:$0xf]
    %v126 = vld [vmem:[#allocation4 + $0x34] sm:$0xf]
    %v127 = vld [vmem:[#allocation4 + $0x38] sm:$0xf]
    %v128 = vld [vmem:[#allocation4 + $0x3c] sm:$0xf]
    %v137 = vunpack.c.l.b16 %v105
    %v138 = vunpack.c.l.b16 %v106
    %v139 = vunpack.c.l.b16 %v107
    %v140 = vunpack.c.l.b16 %v108
    %v141 = vunpack.c.l.b16 %v109
    %v142 = vunpack.c.l.b16 %v110
    %v143 = vunpack.c.l.b16 %v111
    %v144 = vunpack.c.l.b16 %v112
    %v145 = vpack.c.b16 %v138, %v137
    %v146 = vpack.c.b16 %v140, %v139
    %v147 = vpack.c.b16 %v142, %v141
    %v148 = vpack.c.b16 %v144, %v143
    %v169 = vunpack.c.l.b16 %v113
    %v170 = vunpack.c.l.b16 %v114
    %v171 = vunpack.c.l.b16 %v115
    %v172 = vunpack.c.l.b16 %v116
    %v173 = vunpack.c.l.b16 %v117
    %v174 = vunpack.c.l.b16 %v118
    %v175 = vunpack.c.l.b16 %v119
    %v176 = vunpack.c.l.b16 %v120
    %v177 = vunpack.c.l.b16 %v121
    %v178 = vunpack.c.l.b16 %v122
    %v179 = vunpack.c.l.b16 %v123
    %v180 = vunpack.c.l.b16 %v124
    %v181 = vunpack.c.l.b16 %v125
    %v182 = vunpack.c.l.b16 %v126
    %v183 = vunpack.c.l.b16 %v127
    %v184 = vunpack.c.l.b16 %v128
    %v185 = vpack.c.b16 %v170, %v169
    %v186 = vpack.c.b16 %v172, %v171
    %v187 = vpack.c.b16 %v174, %v173
    %v188 = vpack.c.b16 %v176, %v175
    %v189 = vpack.c.b16 %v178, %v177
    %v190 = vpack.c.b16 %v180, %v179
    %v191 = vpack.c.b16 %v182, %v181
    %v192 = vpack.c.b16 %v184, %v183
    %201 = vmatprep.subr.bf16.mxu0 0
    %202 = vmatpush1.bf16.msra.mxu0 %v185
    %203 = vmatprep.subr.bf16.mxu0 0
    %204 = vmatpush1.bf16.msra.mxu0 %v186
    %205 = vmatprep.subr.bf16.mxu0 0
    %206 = vmatpush1.bf16.msra.mxu0 %v187
    %207 = vmatprep.subr.bf16.mxu0 0
    %208 = vmatpush1.bf16.msra.mxu0 %v188
    %209 = vmatprep.subr.bf16.mxu0 0
    %210 = vmatpush1.bf16.msra.mxu0 %v189
    %211 = vmatprep.subr.bf16.mxu0 0
    %212 = vmatpush1.bf16.msra.mxu0 %v190
    %213 = vmatprep.subr.bf16.mxu0 0
    %214 = vmatpush1.bf16.msra.mxu0 %v191
    %215 = vmatprep.subr.bf16.mxu0 0
    %216 = vmatpush1.bf16.msra.mxu0 %v192
    %217 = vmatprep.subr.bf16.mxu0 0
    %218 = vmatpush1.bf16.msra.mxu0 0
    %219 = vmatprep.subr.bf16.mxu0 0
    %220 = vmatpush1.bf16.msra.mxu0 0
    %221 = vmatprep.subr.bf16.mxu0 0
    %222 = vmatpush1.bf16.msra.mxu0 0
    %223 = vmatprep.subr.bf16.mxu0 0
    %224 = vmatpush1.bf16.msra.mxu0 0
    %225 = vmatprep.subr.bf16.mxu0 0
    %226 = vmatpush1.bf16.msra.mxu0 0
    %227 = vmatprep.subr.bf16.mxu0 0
    %228 = vmatpush1.bf16.msra.mxu0 0
    %229 = vmatprep.subr.bf16.mxu0 0
    %230 = vmatpush1.bf16.msra.mxu0 0
    %231 = vmatprep.subr.bf16.mxu0 0
    %232 = vmatpush1.bf16.msra.mxu0 0
    %233 = vmatprep.mubr.bf16.mxu0 0
    %234 = vmatmul.mubr.bf16.gmra.mrb[0].mxu0 %v145
    %v235 = vpop.f32.mrb[0].mxu0
    %v236 = vadd.f32 0.0, %v235
    %v237 = vpop.f32.mrb[0].mxu0
    %v238 = vpop.f32.mrb[0].mxu0
    %v239 = vadd.f32 0.0, %v238
    %v240 = vpop.f32.mrb[0].mxu0
    %241 = vmatprep.mubr.bf16.mxu0 0
    %242 = vmatmul.mubr.bf16.gmra.mrb[0].mxu0 %v146
    %v243 = vpop.f32.mrb[0].mxu0
    %v244 = vadd.f32 0.0, %v243
    %v245 = vpop.f32.mrb[0].mxu0
    %v246 = vpop.f32.mrb[0].mxu0
    %v247 = vadd.f32 0.0, %v246
    %v248 = vpop.f32.mrb[0].mxu0
    %249 = vmatprep.mubr.bf16.mxu0 0
    %250 = vmatmul.mubr.bf16.gmra.mrb[0].mxu0 %v147
    %v251 = vpop.f32.mrb[0].mxu0
    %v252 = vadd.f32 0.0, %v251
    %v253 = vpop.f32.mrb[0].mxu0
    %v254 = vpop.f32.mrb[0].mxu0
    %v255 = vadd.f32 0.0, %v254
    %v256 = vpop.f32.mrb[0].mxu0
    %257 = vmatprep.mubr.bf16.mxu0 0
    %258 = vmatmul.mubr.bf16.gmra.mrb[0].mxu0 %v148
    %v259 = vpop.f32.mrb[0].mxu0
    %v260 = vadd.f32 0.0, %v259
    %v261 = vpop.f32.mrb[0].mxu0
    %v262 = vpop.f32.mrb[0].mxu0
    %v263 = vadd.f32 0.0, %v262
    %v264 = vpop.f32.mrb[0].mxu0
    %265 = vdwg.mxu0
    %v266 = vadd.f32 %v103, %v236
    %v267 = vadd.f32 %v103, %v239
    %v268 = vadd.f32 %v103, %v244
    %v269 = vadd.f32 %v103, %v247
    %v270 = vadd.f32 %v103, %v252
    %v271 = vadd.f32 %v103, %v255
    %v272 = vadd.f32 %v103, %v260
    %v273 = vadd.f32 %v103, %v263
    %274 = vst [vmem:[#allocation7] sm:$0xff] %v266
    %275 = vst [vmem:[#allocation7 + $0x8] sm:$0xff] %v267
    %276 = vst [vmem:[#allocation7 + $0x10] sm:$0xff] %v268
    %277 = vst [vmem:[#allocation7 + $0x18] sm:$0xff] %v269
    %278 = vst [vmem:[#allocation7 + $0x20] sm:$0xff] %v270
    %279 = vst [vmem:[#allocation7 + $0x28] sm:$0xff] %v271
    %280 = vst [vmem:[#allocation7 + $0x30] sm:$0xff] %v272
    %281 = vst [vmem:[#allocation7 + $0x38] sm:$0xff] %v273
    %vm282 = vcmp.ge.f32.partialorder %v266, 0.0
    %vm283 = vcmp.ge.f32.partialorder %v267, 0.0
    %vm284 = vcmp.ge.f32.partialorder %v268, 0.0
    %vm285 = vcmp.ge.f32.partialorder %v269, 0.0
    %vm286 = vcmp.ge.f32.partialorder %v270, 0.0
    %vm287 = vcmp.ge.f32.partialorder %v271, 0.0
    %vm288 = vcmp.ge.f32.partialorder %v272, 0.0
    %vm289 = vcmp.ge.f32.partialorder %v273, 0.0
    %v290 = vmul.f32 %v266, 0.1
    %v291 = vmul.f32 %v267, 0.1
    %v292 = vmul.f32 %v268, 0.1
    %v293 = vmul.f32 %v269, 0.1
    %v294 = vmul.f32 %v270, 0.1
    %v295 = vmul.f32 %v271, 0.1
    %v296 = vmul.f32 %v272, 0.1
    %v297 = vmul.f32 %v273, 0.1
    %v298 = vsel %vm282, %v266, %v290
    %v299 = vsel %vm283, %v267, %v291
    %v300 = vsel %vm284, %v268, %v292
    %v301 = vsel %vm285, %v269, %v293
    %v302 = vsel %vm286, %v270, %v294
    %v303 = vsel %vm287, %v271, %v295
    %v304 = vsel %vm288, %v272, %v296
    %v305 = vsel %vm289, %v273, %v297
    %v306 = vpack.c.bf16 %v298, %v298
    %v307 = vpack.c.bf16 %v299, %v299
    %v308 = vpack.c.bf16 %v300, %v300
    %v309 = vpack.c.bf16 %v301, %v301
    %v310 = vpack.c.bf16 %v302, %v302
    %v311 = vpack.c.bf16 %v303, %v303
    %v312 = vpack.c.bf16 %v304, %v304
    %v313 = vpack.c.bf16 %v305, %v305
    %314 = vst [vmem:[#allocation8] sm:$0xf] %v306
    %315 = vst [vmem:[#allocation8 + $0x4] sm:$0xf] %v307
    %316 = vst [vmem:[#allocation8 + $0x8] sm:$0xf] %v308
    %317 = vst [vmem:[#allocation8 + $0xc] sm:$0xf] %v309
    %318 = vst [vmem:[#allocation8 + $0x10] sm:$0xf] %v310
    %319 = vst [vmem:[#allocation8 + $0x14] sm:$0xf] %v311
    %320 = vst [vmem:[#allocation8 + $0x18] sm:$0xf] %v312
    %321 = vst [vmem:[#allocation8 + $0x1c] sm:$0xf] %v313
    // Predicated region
    $region30: #{tpu_custom_call.1} parent=1 // pred_check
      _
    $region31: #{tpu_custom_call.1} parent=1 // pred_check_branch
      %323 = sbr.rel (0) target = $region33
    $region32: #{tpu_custom_call.1} parent=1 // pred_region
      %s325 = ssub.s32 1024, 1024
      %326 = vsyncadd [#allocation6], %s325
      %s327 = sshll.u32 [#allocation7], 4
      %s328 = int_to_ptr.vmem [resolvable:$true] %s327
      %333 = dma.vmem_to_hbm [thread:$0]  %s328, 1024, %s3, [#allocation6], 128, 128, 8
    $region33: #{tpu_custom_call.1} parent=1 // pred_fallthru
      _
    // Predicated region
    $region34: #{tpu_custom_call.1} parent=1 // pred_check
      _
    $region35: #{tpu_custom_call.1} parent=1 // pred_check_branch
      %335 = sbr.rel (0) target = $region37
    $region36: #{tpu_custom_call.1} parent=1 // pred_region
      %s337 = ssub.s32 512, 512
      %338 = vsyncadd [#allocation9], %s337
      %s339 = sshll.u32 [#allocation8], 4
      %s340 = int_to_ptr.vmem [resolvable:$true] %s339
      %345 = dma.vmem_to_hbm [thread:$0]  %s340, 512, %s4, [#allocation9], 64, 64, 4
    $region37: #{tpu_custom_call.1} parent=1 // pred_fallthru
      _
    // Predicated region
    $region38: #{tpu_custom_call.1} parent=1 // pred_check
      _
    $region39: #{tpu_custom_call.1} parent=1 // pred_check_branch
      %347 = sbr.rel (0) target = $region41
    $region40: #{tpu_custom_call.1} parent=1 // pred_region
      %348 = dma.done [#allocation6], 1024
    $region41: #{tpu_custom_call.1} parent=1 // pred_fallthru
      _
    // Predicated region
    $region42: #{tpu_custom_call.1} parent=1 // pred_check
      _
    $region43: #{tpu_custom_call.1} parent=1 // pred_check_branch
      %350 = sbr.rel (0) target = $region45
    $region44: #{tpu_custom_call.1} parent=1 // pred_region
      %351 = dma.done [#allocation9], 512
    $region45: #{tpu_custom_call.1} parent=1 // pred_fallthru
      _
    %352 = vsyncpa [#allocation5], 1
    %353 = vsyncpa [#allocation6], 1
    %354 = vsyncpa [#allocation9], 1
  %355 = vsyncmov [#allocation3]
  %s356 = vpop.sfrf %355
  %p357 = scmp.eq.s32.totalorder %s356, 0
  %p358 = pneg %p357
  %360 = shalt.err (%p358)
  %s361 = scalar_lea.sflag [#allocation3], 1
  %362 = vsyncmov %s361
  %s363 = vpop.sfrf %362
  %p364 = scmp.eq.s32.totalorder %s363, 0
  %p365 = pneg %p364
  %367 = shalt.err (%p365)

</llo_original>
